<compile_context>
chip_gen: v5e
topology: v5e:2x2
jax: 0.10.0
libtpu: 0.0.40
codegen_flags: <defaults>
</compile_context>

<pallas_src>
import functools

import jax
import jax.numpy as jnp
from jax.experimental import pallas as pl
from jax.experimental.pallas import tpu as pltpu

HIDDEN = 128
LANE = 128
SMALL_BATCH = 128        # <= this: no-grid, fully VMEM-resident path
TARGET_TILE = 512        # aim for ~512-row tiles on the batched path


def _round_up(n, m):
    return ((n + m - 1) // m) * m


def _cdiv(a, b):
    return -(-a // b)


# ---------------------------------------------------------------------------
# Kernel body (shared by the no-grid and the batch-tiled paths).
# ---------------------------------------------------------------------------
def _actor_kernel(x_ref, w1_ref, b1_ref, w2_ref, b2_ref, w3_ref, b3_ref, o_ref):
    # x tile: (rows, state_dim) f32 -> bf16 cast in-kernel (no wrapper pad).
    x = x_ref[...].astype(jnp.bfloat16)

    # fc1 + LeakyReLU(0.01): f32 MXU accumulation, element-wise math in bf16.
    h1 = jnp.dot(x, w1_ref[...], preferred_element_type=jnp.float32) + b1_ref[...]
    h1 = h1.astype(jnp.bfloat16)
    h1 = jnp.where(h1 > 0, h1, 0.01 * h1)

    # fc2 + LeakyReLU(0.01)
    h2 = jnp.dot(h1, w2_ref[...], preferred_element_type=jnp.float32) + b2_ref[...]
    h2 = h2.astype(jnp.bfloat16)
    h2 = jnp.where(h2 > 0, h2, 0.01 * h2)

    # fc3 + Sigmoid (sigmoid in f32, stored as a bf16 lane-dense slab)
    h3 = jnp.dot(h2, w3_ref[...], preferred_element_type=jnp.float32) + b3_ref[...]
    o_ref[...] = jax.nn.sigmoid(h3).astype(o_ref.dtype)


# ---------------------------------------------------------------------------
# One-time parameter layout (call once, outside the hot path).
# ---------------------------------------------------------------------------
def prepare_actor_params(params):
    """bf16 weights, f32 (1,H) biases; output layer lane-padded to 128 cols."""
    w1, b1, w2, b2, w3, b3 = params
    hidden = w1.shape[1]
    action_dim = w3.shape[1]
    n_pad = _round_up(action_dim, LANE)

    w1c = w1.astype(jnp.bfloat16)                               # (state_dim, 128)
    b1c = jnp.reshape(b1, (1, hidden)).astype(jnp.float32)
    w2c = w2.astype(jnp.bfloat16)                               # (128, 128)
    b2c = jnp.reshape(b2, (1, hidden)).astype(jnp.float32)
    w3p = jnp.zeros((hidden, n_pad), jnp.bfloat16).at[:, :action_dim].set(
        w3.astype(jnp.bfloat16))
    b3p = jnp.zeros((1, n_pad), jnp.float32).at[:, :action_dim].set(
        jnp.reshape(b3, (1, action_dim)).astype(jnp.float32))
    return (w1c, b1c, w2c, b2c, w3p, b3p)


# ---------------------------------------------------------------------------
# Forward pass.
# ---------------------------------------------------------------------------
@functools.partial(jax.jit, static_argnames=("action_dim",))
def actor_forward(x, prepared, *, action_dim):
    """x: (batch, state_dim) f32. Returns (batch, action_dim) f32."""
    w1c, b1c, w2c, b2c, w3p, b3p = prepared
    batch, state_dim = x.shape
    hidden = w1c.shape[1]
    n_pad = w3p.shape[1]

    if batch <= SMALL_BATCH:
        # No-grid path: the whole (tiny) problem lives in VMEM for one
        # invocation; no batch padding, no pipeline machinery.
        out_slab = pl.pallas_call(
            _actor_kernel,
            out_shape=jax.ShapeDtypeStruct((batch, n_pad), jnp.bfloat16),
        )(x, w1c, b1c, w2c, b2c, w3p, b3p)
        return out_slab[:, :action_dim].astype(jnp.float32)

    # ---- batch-tiled streaming path ---------------------------------------
    # ~TARGET_TILE rows per tile, multiple of 16 (bf16 sublane pack), bounded
    # padding waste; >= 2 tiles once batch >= 256 so v7x's two TensorCores
    # both get work on the "parallel" grid axis.
    n_tiles = max(_cdiv(batch, TARGET_TILE), 2 if batch >= 256 else 1)
    tile_b = _round_up(_cdiv(batch, n_tiles), 16)
    grid_steps = _cdiv(batch, tile_b)
    padded_batch = grid_steps * tile_b

    if padded_batch != batch:
        xp = jnp.zeros((padded_batch, state_dim), x.dtype).at[:batch, :].set(x)
    else:
        xp = x

    flops = 2 * padded_batch * (state_dim * hidden + hidden * hidden + hidden * n_pad)
    bytes_accessed = (xp.size * xp.dtype.itemsize
                      + (w1c.size + w2c.size + w3p.size) * 2
                      + (b1c.size + b2c.size + b3p.size) * 4
                      + padded_batch * n_pad * 2)
    cost = pl.CostEstimate(flops=flops,
                           transcendentals=padded_batch * n_pad,
                           bytes_accessed=bytes_accessed)

    resident = lambda i: (0, 0)   # weights/biases DMA'd once, stay VMEM-resident
    out_slab = pl.pallas_call(
        _actor_kernel,
        out_shape=jax.ShapeDtypeStruct((padded_batch, n_pad), jnp.bfloat16),
        grid=(grid_steps,),
        in_specs=[
            pl.BlockSpec((tile_b, state_dim), lambda i: (i, 0)),  # x (real last dim)
            pl.BlockSpec((state_dim, hidden), resident),          # w1
            pl.BlockSpec((1, hidden), resident),                  # b1
            pl.BlockSpec((hidden, hidden), resident),             # w2
            pl.BlockSpec((1, hidden), resident),                  # b2
            pl.BlockSpec((hidden, n_pad), resident),              # w3 (lane-padded)
            pl.BlockSpec((1, n_pad), resident),                   # b3 (lane-padded)
        ],
        out_specs=pl.BlockSpec((tile_b, n_pad), lambda i: (i, 0)),
        compiler_params=pltpu.CompilerParams(
            dimension_semantics=("parallel",)),                   # v7x: 2 TCs
        cost_estimate=cost,
    )(xp, w1c, b1c, w2c, b2c, w3p, b3p)

    return out_slab[:batch, :action_dim].astype(jnp.float32)


# ---------------------------------------------------------------------------
# Init + pure-JAX f32 reference.
# ---------------------------------------------------------------------------
def init_actor_params(key, state_dim, action_dim):
    """Deterministic init mimicking torch.nn.Linear (U[-1/sqrt(fan_in), +])."""
    def linear(key, fan_in, fan_out):
        kw, kb = jax.random.split(key)
        bound = 1.0 / jnp.sqrt(jnp.float32(fan_in))
        # stored as (in, out) so the kernel computes x @ W + b
        w = jax.random.uniform(kw, (fan_in, fan_out), jnp.float32, -bound, bound)
        b = jax.random.uniform(kb, (1, fan_out), jnp.float32, -bound, bound)
        return w, b

    k1, k2, k3 = jax.random.split(key, 3)
    w1, b1 = linear(k1, state_dim, HIDDEN)
    w2, b2 = linear(k2, HIDDEN, HIDDEN)
    w3, b3 = linear(k3, HIDDEN, action_dim)
    return (w1, b1, w2, b2, w3, b3)


def reference_forward(x, params):
    w1, b1, w2, b2, w3, b3 = params
    lrelu = lambda v: jnp.where(v > 0, v, 0.01 * v)
    h = lrelu(x @ w1 + b1)
    h = lrelu(h @ w2 + b2)
    return jax.nn.sigmoid(h @ w3 + b3)


if __name__ == "__main__":
    key = jax.random.PRNGKey(0)
    k_params, k_x1, k_x2 = jax.random.split(key, 3)

    state_dim, action_dim = 16, 4
    raw_params = init_actor_params(k_params, state_dim, action_dim)
    prepared = prepare_actor_params(raw_params)   # one-time layout / bf16 cast

    # Small (production-like) batch: exercises the no-grid VMEM-resident path.
    x_small = jax.random.normal(k_x1, (8, state_dim), jnp.float32)
    out_small = jax.block_until_ready(
        actor_forward(x_small, prepared, action_dim=action_dim))
    ref_small = reference_forward(x_small, raw_params)
    assert out_small.shape == (8, action_dim)
    # bf16 MXU inputs / bf16 output slab (f32 accumulation) -> loose tolerance.
    assert jnp.allclose(out_small, ref_small, atol=2.5e-2, rtol=2.5e-2), float(
        jnp.max(jnp.abs(out_small - ref_small)))

    # Larger batch: exercises the batch-tiled path (2 "parallel" grid steps).
    x_big = jax.random.normal(k_x2, (300, state_dim), jnp.float32)
    out_big = jax.block_until_ready(
        actor_forward(x_big, prepared, action_dim=action_dim))
    ref_big = reference_forward(x_big, raw_params)
    assert out_big.shape == (300, action_dim)
    assert jnp.allclose(out_big, ref_big, atol=2.5e-2, rtol=2.5e-2), float(
        jnp.max(jnp.abs(out_big - ref_big)))

    print("KERNEL_OK")
</pallas_src>

<mosaic_0001>
module attributes {stable_mosaic.version = 11 : i64} {
  func.func @_actor_kernel(%arg0: memref<8x16xf32, #tpu.memory_space<vmem>>, %arg1: memref<16x128xbf16, #tpu.memory_space<vmem>>, %arg2: memref<1x128xf32, #tpu.memory_space<vmem>>, %arg3: memref<128x128xbf16, #tpu.memory_space<vmem>>, %arg4: memref<1x128xf32, #tpu.memory_space<vmem>>, %arg5: memref<128x128xbf16, #tpu.memory_space<vmem>>, %arg6: memref<1x128xf32, #tpu.memory_space<vmem>>, %arg7: memref<8x128xbf16, #tpu.memory_space<vmem>>) attributes {dimension_semantics = [], scalar_prefetch = 0 : i64, scratch_operands = 0 : i64, tpu.core_type = #tpu.core_type<tc>} {
    %c0 = arith.constant 0 : index
    %c0_0 = arith.constant 0 : index
    %0 = vector.load %arg0[%c0, %c0_0] : memref<8x16xf32, #tpu.memory_space<vmem>>, vector<8x16xf32>
    %1 = arith.truncf %0 : vector<8x16xf32> to vector<8x16xbf16>
    %c0_1 = arith.constant 0 : index
    %c0_2 = arith.constant 0 : index
    %2 = vector.load %arg1[%c0_1, %c0_2] : memref<16x128xbf16, #tpu.memory_space<vmem>>, vector<16x128xbf16>
    %cst = arith.constant dense<0.000000e+00> : vector<8x128xf32>
    %3 = tpu.matmul %1, %2, %cst {dimension_numbers = #tpu.dot_dimension_numbers<[1], [0], [0], [1], [0, 0, 1, 1], [], []>} : vector<8x16xbf16>, vector<16x128xbf16>, vector<8x128xf32> -> vector<8x128xf32>
    %c0_3 = arith.constant 0 : index
    %c0_4 = arith.constant 0 : index
    %4 = vector.load %arg2[%c0_3, %c0_4] : memref<1x128xf32, #tpu.memory_space<vmem>>, vector<1x128xf32>
    %5 = vector.broadcast %4 : vector<1x128xf32> to vector<8x128xf32>
    %6 = arith.addf %3, %5 : vector<8x128xf32>
    %7 = arith.truncf %6 : vector<8x128xf32> to vector<8x128xbf16>
    %cst_5 = arith.constant 0.000000e+00 : bf16
    %8 = vector.broadcast %cst_5 : bf16 to vector<8x128xbf16>
    %9 = arith.cmpf ogt, %7, %8 : vector<8x128xbf16>
    %cst_6 = arith.constant 1.000980e-02 : bf16
    %10 = vector.broadcast %cst_6 : bf16 to vector<8x128xbf16>
    %11 = arith.mulf %10, %7 : vector<8x128xbf16>
    %12 = arith.select %9, %7, %11 : vector<8x128xi1>, vector<8x128xbf16>
    %c0_7 = arith.constant 0 : index
    %c0_8 = arith.constant 0 : index
    %13 = vector.load %arg3[%c0_7, %c0_8] : memref<128x128xbf16, #tpu.memory_space<vmem>>, vector<128x128xbf16>
    %cst_9 = arith.constant dense<0.000000e+00> : vector<8x128xf32>
    %14 = tpu.matmul %12, %13, %cst_9 {dimension_numbers = #tpu.dot_dimension_numbers<[1], [0], [0], [1], [0, 0, 1, 1], [], []>} : vector<8x128xbf16>, vector<128x128xbf16>, vector<8x128xf32> -> vector<8x128xf32>
    %c0_10 = arith.constant 0 : index
    %c0_11 = arith.constant 0 : index
    %15 = vector.load %arg4[%c0_10, %c0_11] : memref<1x128xf32, #tpu.memory_space<vmem>>, vector<1x128xf32>
    %16 = vector.broadcast %15 : vector<1x128xf32> to vector<8x128xf32>
    %17 = arith.addf %14, %16 : vector<8x128xf32>
    %18 = arith.truncf %17 : vector<8x128xf32> to vector<8x128xbf16>
    %cst_12 = arith.constant 0.000000e+00 : bf16
    %19 = vector.broadcast %cst_12 : bf16 to vector<8x128xbf16>
    %20 = arith.cmpf ogt, %18, %19 : vector<8x128xbf16>
    %cst_13 = arith.constant 1.000980e-02 : bf16
    %21 = vector.broadcast %cst_13 : bf16 to vector<8x128xbf16>
    %22 = arith.mulf %21, %18 : vector<8x128xbf16>
    %23 = arith.select %20, %18, %22 : vector<8x128xi1>, vector<8x128xbf16>
    %c0_14 = arith.constant 0 : index
    %c0_15 = arith.constant 0 : index
    %24 = vector.load %arg5[%c0_14, %c0_15] : memref<128x128xbf16, #tpu.memory_space<vmem>>, vector<128x128xbf16>
    %cst_16 = arith.constant dense<0.000000e+00> : vector<8x128xf32>
    %25 = tpu.matmul %23, %24, %cst_16 {dimension_numbers = #tpu.dot_dimension_numbers<[1], [0], [0], [1], [0, 0, 1, 1], [], []>} : vector<8x128xbf16>, vector<128x128xbf16>, vector<8x128xf32> -> vector<8x128xf32>
    %c0_17 = arith.constant 0 : index
    %c0_18 = arith.constant 0 : index
    %26 = vector.load %arg6[%c0_17, %c0_18] : memref<1x128xf32, #tpu.memory_space<vmem>>, vector<1x128xf32>
    %27 = vector.broadcast %26 : vector<1x128xf32> to vector<8x128xf32>
    %28 = arith.addf %25, %27 : vector<8x128xf32>
    %29 = arith.negf %28 : vector<8x128xf32>
    %30 = math.exp %29 : vector<8x128xf32>
    %cst_19 = arith.constant 1.000000e+00 : f32
    %31 = vector.broadcast %cst_19 : f32 to vector<8x128xf32>
    %32 = arith.addf %31, %30 : vector<8x128xf32>
    %33 = arith.divf %31, %32 : vector<8x128xf32>
    %34 = arith.truncf %33 : vector<8x128xf32> to vector<8x128xbf16>
    %c0_20 = arith.constant 0 : index
    %c0_21 = arith.constant 0 : index
    %35 = vector.load %arg7[%c0_20, %c0_21] : memref<8x128xbf16, #tpu.memory_space<vmem>>, vector<8x128xbf16>
    tpu.vector_store %arg7[%c0_20, %c0_21], %34 {strides = array<i32>} : memref<8x128xbf16, #tpu.memory_space<vmem>>, vector<8x128xbf16>,
    return
  }
}

</mosaic_0001>

<llo_original>
// kernel: actor_forward.1
$region0: #{actor_forward.1}
  #allocation0 [shape = 'u32[]', space=smem, size = 0x4, offset = 0x4, fixed_abs, tag = 'smem constant byte address 0x4 - core index']
  #allocation1 [shape = 'u32[72,128]{1,0:T(1,128)}', space=vmem, size = 0x9000, scoped, tag = 'internal scratch']
  %s0 = inlined_call_operand.hbm [shape: f32[8,16], index: 0, kind: input, shape index: {}]
  %s1 = inlined_call_operand.hbm [shape: bf16[16,128], index: 1, kind: input, shape index: {}]
  %s2 = inlined_call_operand.vmem [shape: f32[1,128], index: 2, kind: input, shape index: {}]
  %s3 = inlined_call_operand.hbm [shape: bf16[128,128], index: 3, kind: input, shape index: {}]
  %s4 = inlined_call_operand.vmem [shape: f32[1,128], index: 4, kind: input, shape index: {}]
  %s5 = inlined_call_operand.hbm [shape: bf16[128,128], index: 5, kind: input, shape index: {}]
  %s6 = inlined_call_operand.vmem [shape: f32[1,128], index: 6, kind: input, shape index: {}]
  %s7 = inlined_call_operand.vmem [shape: bf16[8,128], index: 7, kind: output, shape index: {}]
  %s8 = sld [smem:[#allocation0]]
  $region54: #{actor_forward.1} parent=0
    _
  %s10 = ssub.s32 1, %s8
  %s11 = scalar_select 0, %s10, %s8
  $region1: #{actor_forward.1} parent=0
    #allocation2 [shape = 'u8[4096]{0}', space=vmem, size = 0x1000, scoped, tag = 'input window, operand 0, single buffered']
    #allocation3 [shape = 's32[1]{0}', space=sflag, size = 0x4, scoped, tag = 'scoped memory for actor_forward.1']
    #allocation4 [shape = 'u8[4096]{0}', space=vmem, size = 0x1000, scoped, tag = 'input window, operand 1, single buffered']
    #allocation5 [shape = 's32[1]{0}', space=sflag, size = 0x4, scoped, tag = 'scoped memory for actor_forward.1']
    #allocation6 [shape = 'u8[32768]{0}', space=vmem, size = 0x8000, scoped, tag = 'input window, operand 3, single buffered']
    #allocation7 [shape = 'u8[32768]{0}', space=vmem, size = 0x8000, scoped, tag = 'input window, operand 5, single buffered']
    #allocation8 [shape = 's32[1]{0}', space=sflag, size = 0x4, scoped, tag = 'scoped memory for actor_forward.1']
    %12 = vsyncpa [#allocation3], 0
    %13 = vsyncpa [#allocation5], 0
    %14 = vsyncpa [#allocation8], 0
    // Predicated region
    $region2: #{actor_forward.1} parent=1 // pred_check
      _
    $region3: #{actor_forward.1} parent=1 // pred_check_branch
      %16 = sbr.rel (0) target = $region5
    $region4: #{actor_forward.1} parent=1 // pred_region
      %18 = vsyncadd [#allocation3], 0
      %s20 = sshll.u32 %s0, 4
      %s21 = int_to_ptr.hbm [resolvable:$true] %s20
      %s22 = sshll.u32 [#allocation2], 4
      %s23 = int_to_ptr.vmem [resolvable:$true] %s22
      %25 = dma.hbm_to_vmem [thread:$0]  %s21, 128, %s23, [#allocation3]
    $region5: #{actor_forward.1} parent=1 // pred_fallthru
      _
    // Predicated region
    $region6: #{actor_forward.1} parent=1 // pred_check
      _
    $region7: #{actor_forward.1} parent=1 // pred_check_branch
      %27 = sbr.rel (0) target = $region9
    $region8: #{actor_forward.1} parent=1 // pred_region
      %29 = vsyncadd [#allocation5], 0
      %s30 = sshll.u32 %s1, 4
      %s31 = int_to_ptr.hbm [resolvable:$true] %s30
      %s32 = sshll.u32 [#allocation4], 4
      %s33 = int_to_ptr.vmem [resolvable:$true] %s32
      %38 = dma.hbm_to_vmem [thread:$0]  %s31, 128, %s33, [#allocation5], 64, 64, 4
    $region9: #{actor_forward.1} parent=1 // pred_fallthru
      _
    // Predicated region
    $region10: #{actor_forward.1} parent=1 // pred_check
      _
    $region11: #{actor_forward.1} parent=1 // pred_check_branch
      %40 = sbr.rel (0) target = $region13
    $region12: #{actor_forward.1} parent=1 // pred_region
      _
    $region13: #{actor_forward.1} parent=1 // pred_fallthru
      _
    // Predicated region
    $region14: #{actor_forward.1} parent=1 // pred_check
      _
    $region15: #{actor_forward.1} parent=1 // pred_check_branch
      %42 = sbr.rel (0) target = $region17
    $region16: #{actor_forward.1} parent=1 // pred_region
      %44 = vsyncadd [#allocation5], 0
      %s45 = sshll.u32 %s3, 4
      %s46 = int_to_ptr.hbm [resolvable:$true] %s45
      %s47 = sshll.u32 [#allocation6], 4
      %s48 = int_to_ptr.vmem [resolvable:$true] %s47
      %53 = dma.hbm_to_vmem [thread:$0]  %s46, 1024, %s48, [#allocation5], 64, 64, 4
    $region17: #{actor_forward.1} parent=1 // pred_fallthru
      _
    // Predicated region
    $region18: #{actor_forward.1} parent=1 // pred_check
      _
    $region19: #{actor_forward.1} parent=1 // pred_check_branch
      %55 = sbr.rel (0) target = $region21
    $region20: #{actor_forward.1} parent=1 // pred_region
      _
    $region21: #{actor_forward.1} parent=1 // pred_fallthru
      _
    // Predicated region
    $region22: #{actor_forward.1} parent=1 // pred_check
      _
    $region23: #{actor_forward.1} parent=1 // pred_check_branch
      %57 = sbr.rel (0) target = $region25
    $region24: #{actor_forward.1} parent=1 // pred_region
      %59 = vsyncadd [#allocation8], 0
      %s60 = sshll.u32 %s5, 4
      %s61 = int_to_ptr.hbm [resolvable:$true] %s60
      %s62 = sshll.u32 [#allocation7], 4
      %s63 = int_to_ptr.vmem [resolvable:$true] %s62
      %68 = dma.hbm_to_vmem [thread:$0]  %s61, 1024, %s63, [#allocation8], 64, 64, 4
    $region25: #{actor_forward.1} parent=1 // pred_fallthru
      _
    // Predicated region
    $region26: #{actor_forward.1} parent=1 // pred_check
      _
    $region27: #{actor_forward.1} parent=1 // pred_check_branch
      %70 = sbr.rel (0) target = $region29
    $region28: #{actor_forward.1} parent=1 // pred_region
      _
    $region29: #{actor_forward.1} parent=1 // pred_fallthru
      _
    // Predicated region
    $region30: #{actor_forward.1} parent=1 // pred_check
      _
    $region31: #{actor_forward.1} parent=1 // pred_check_branch
      %72 = sbr.rel (0) target = $region33
    $region32: #{actor_forward.1} parent=1 // pred_region
      %74 = dma.done [#allocation3], 128
    $region33: #{actor_forward.1} parent=1 // pred_fallthru
      _
    // Predicated region
    $region34: #{actor_forward.1} parent=1 // pred_check
      _
    $region35: #{actor_forward.1} parent=1 // pred_check_branch
      %76 = sbr.rel (0) target = $region37
    $region36: #{actor_forward.1} parent=1 // pred_region
      %78 = dma.done [#allocation5], 128
    $region37: #{actor_forward.1} parent=1 // pred_fallthru
      _
    // Predicated region
    $region38: #{actor_forward.1} parent=1 // pred_check
      _
    $region39: #{actor_forward.1} parent=1 // pred_check_branch
      %80 = sbr.rel (0) target = $region41
    $region40: #{actor_forward.1} parent=1 // pred_region
      %82 = dma.done [#allocation5], 1024
    $region41: #{actor_forward.1} parent=1 // pred_fallthru
      _
    // Predicated region
    $region42: #{actor_forward.1} parent=1 // pred_check
      _
    $region43: #{actor_forward.1} parent=1 // pred_check_branch
      %84 = sbr.rel (0) target = $region45
    $region44: #{actor_forward.1} parent=1 // pred_region
      %86 = dma.done [#allocation8], 1024
    $region45: #{actor_forward.1} parent=1 // pred_fallthru
      _
    %v88 = vld [vmem:[#allocation2] sm:$0xff]
    %v89 = vpack.c.bf16 %v88, %v88
    %v90 = vld [vmem:[#allocation4] sm:$0xf]
    %v91 = vld [vmem:[#allocation4 + $0x4] sm:$0xf]
    %v92 = vld [vmem:[%s2] sm:$0x1]
    %v94 = vperm.slane %v92, 0
    %v98 = vunpack.c.l.b16 %v90
    %v99 = vunpack.c.l.b16 %v91
    %v100 = vpack.c.b16 %v99, %v98
    %vm102 = vcmask 130048
    %v104 = vsel %vm102, %v89, 0
    %106 = vmatpush.bf16.msra.mxu0 0
    %107 = vmatpush.bf16.msra.mxu0 0
    %108 = vmatpush.bf16.msra.mxu0 0
    %109 = vmatpush.bf16.msra.mxu0 0
    %110 = vmatpush.bf16.msra.mxu0 0
    %111 = vmatpush.bf16.msra.mxu0 0
    %112 = vmatpush.bf16.msra.mxu0 0
    %113 = vmatpush.bf16.msra.mxu0 %v100
    %114 = vmatmul.bf16.gmra.mxu0 %v104
    %v115 = vpop.f32.mrf.mxu0
    %v116 = vadd.f32 %v94, %v115
    %v117 = vpop.f32.mrf.mxu0
    %118 = vdwg.mxu0
    %v119 = vpack.c.bf16 %v116, %v116
    %v120 = vunpack.c.l.bf16 %v119
    %vm121 = vcmp.gt.f32.partialorder %v120, 0.0
    %v122 = vmul.f32 %v120, 0.010009766
    %v123 = vpack.c.bf16 %v122, %v122
    %vm124 = vmpackc.low %vm121, %vm121
    %v125 = vsel %vm124, %v119, %v123
    %v126 = vld [vmem:[#allocation6] sm:$0xf]
    %v127 = vld [vmem:[#allocation6 + $0x4] sm:$0xf]
    %v128 = vld [vmem:[#allocation6 + $0x8] sm:$0xf]
    %v129 = vld [vmem:[#allocation6 + $0xc] sm:$0xf]
    %v130 = vld [vmem:[#allocation6 + $0x10] sm:$0xf]
    %v131 = vld [vmem:[#allocation6 + $0x14] sm:$0xf]
    %v132 = vld [vmem:[#allocation6 + $0x18] sm:$0xf]
    %v133 = vld [vmem:[#allocation6 + $0x1c] sm:$0xf]
    %v134 = vld [vmem:[#allocation6 + $0x20] sm:$0xf]
    %v135 = vld [vmem:[#allocation6 + $0x24] sm:$0xf]
    %v136 = vld [vmem:[#allocation6 + $0x28] sm:$0xf]
    %v137 = vld [vmem:[#allocation6 + $0x2c] sm:$0xf]
    %v138 = vld [vmem:[#allocation6 + $0x30] sm:$0xf]
    %v139 = vld [vmem:[#allocation6 + $0x34] sm:$0xf]
    %v140 = vld [vmem:[#allocation6 + $0x38] sm:$0xf]
    %v141 = vld [vmem:[#allocation6 + $0x3c] sm:$0xf]
    %v142 = vld [vmem:[%s4] sm:$0x1]
    %v144 = vperm.slane %v142, 0
    %v162 = vunpack.c.l.b16 %v126
    %v163 = vunpack.c.l.b16 %v127
    %v164 = vunpack.c.l.b16 %v128
    %v165 = vunpack.c.l.b16 %v129
    %v166 = vunpack.c.l.b16 %v130
    %v167 = vunpack.c.l.b16 %v131
    %v168 = vunpack.c.l.b16 %v132
    %v169 = vunpack.c.l.b16 %v133
    %v170 = vunpack.c.l.b16 %v134
    %v171 = vunpack.c.l.b16 %v135
    %v172 = vunpack.c.l.b16 %v136
    %v173 = vunpack.c.l.b16 %v137
    %v174 = vunpack.c.l.b16 %v138
    %v175 = vunpack.c.l.b16 %v139
    %v176 = vunpack.c.l.b16 %v140
    %v177 = vunpack.c.l.b16 %v141
    %v178 = vpack.c.b16 %v163, %v162
    %v179 = vpack.c.b16 %v165, %v164
    %v180 = vpack.c.b16 %v167, %v166
    %v181 = vpack.c.b16 %v169, %v168
    %v182 = vpack.c.b16 %v171, %v170
    %v183 = vpack.c.b16 %v173, %v172
    %v184 = vpack.c.b16 %v175, %v174
    %v185 = vpack.c.b16 %v177, %v176
    %194 = vmatpush.bf16.msra.mxu0 %v185
    %195 = vmatpush.bf16.msra.mxu0 %v184
    %196 = vmatpush.bf16.msra.mxu0 %v183
    %197 = vmatpush.bf16.msra.mxu0 %v182
    %198 = vmatpush.bf16.msra.mxu0 %v181
    %199 = vmatpush.bf16.msra.mxu0 %v180
    %200 = vmatpush.bf16.msra.mxu0 %v179
    %201 = vmatpush.bf16.msra.mxu0 %v178
    %202 = vmatmul.bf16.gmra.mxu0 %v125
    %v203 = vpop.f32.mrf.mxu0
    %v204 = vadd.f32 %v144, %v203
    %v205 = vpop.f32.mrf.mxu0
    %206 = vdwg.mxu0
    %v207 = vpack.c.bf16 %v204, %v204
    %v208 = vunpack.c.l.bf16 %v207
    %vm209 = vcmp.gt.f32.partialorder %v208, 0.0
    %v210 = vmul.f32 %v208, 0.010009766
    %v211 = vpack.c.bf16 %v210, %v210
    %vm212 = vmpackc.low %vm209, %vm209
    %v213 = vsel %vm212, %v207, %v211
    %v214 = vld [vmem:[#allocation7] sm:$0xf]
    %v215 = vld [vmem:[#allocation7 + $0x4] sm:$0xf]
    %v216 = vld [vmem:[#allocation7 + $0x8] sm:$0xf]
    %v217 = vld [vmem:[#allocation7 + $0xc] sm:$0xf]
    %v218 = vld [vmem:[#allocation7 + $0x10] sm:$0xf]
    %v219 = vld [vmem:[#allocation7 + $0x14] sm:$0xf]
    %v220 = vld [vmem:[#allocation7 + $0x18] sm:$0xf]
    %v221 = vld [vmem:[#allocation7 + $0x1c] sm:$0xf]
    %v222 = vld [vmem:[#allocation7 + $0x20] sm:$0xf]
    %v223 = vld [vmem:[#allocation7 + $0x24] sm:$0xf]
    %v224 = vld [vmem:[#allocation7 + $0x28] sm:$0xf]
    %v225 = vld [vmem:[#allocation7 + $0x2c] sm:$0xf]
    %v226 = vld [vmem:[#allocation7 + $0x30] sm:$0xf]
    %v227 = vld [vmem:[#allocation7 + $0x34] sm:$0xf]
    %v228 = vld [vmem:[#allocation7 + $0x38] sm:$0xf]
    %v229 = vld [vmem:[#allocation7 + $0x3c] sm:$0xf]
    %v230 = vld [vmem:[%s6] sm:$0x1]
    %v232 = vperm.slane %v230, 0
    %v250 = vunpack.c.l.b16 %v214
    %v251 = vunpack.c.l.b16 %v215
    %v252 = vunpack.c.l.b16 %v216
    %v253 = vunpack.c.l.b16 %v217
    %v254 = vunpack.c.l.b16 %v218
    %v255 = vunpack.c.l.b16 %v219
    %v256 = vunpack.c.l.b16 %v220
    %v257 = vunpack.c.l.b16 %v221
    %v258 = vunpack.c.l.b16 %v222
    %v259 = vunpack.c.l.b16 %v223
    %v260 = vunpack.c.l.b16 %v224
    %v261 = vunpack.c.l.b16 %v225
    %v262 = vunpack.c.l.b16 %v226
    %v263 = vunpack.c.l.b16 %v227
    %v264 = vunpack.c.l.b16 %v228
    %v265 = vunpack.c.l.b16 %v229
    %v266 = vpack.c.b16 %v251, %v250
    %v267 = vpack.c.b16 %v253, %v252
    %v268 = vpack.c.b16 %v255, %v254
    %v269 = vpack.c.b16 %v257, %v256
    %v270 = vpack.c.b16 %v259, %v258
    %v271 = vpack.c.b16 %v261, %v260
    %v272 = vpack.c.b16 %v263, %v262
    %v273 = vpack.c.b16 %v265, %v264
    %282 = vmatpush.bf16.msra.mxu0 %v273
    %283 = vmatpush.bf16.msra.mxu0 %v272
    %284 = vmatpush.bf16.msra.mxu0 %v271
    %285 = vmatpush.bf16.msra.mxu0 %v270
    %286 = vmatpush.bf16.msra.mxu0 %v269
    %287 = vmatpush.bf16.msra.mxu0 %v268
    %288 = vmatpush.bf16.msra.mxu0 %v267
    %289 = vmatpush.bf16.msra.mxu0 %v266
    %290 = vmatmul.bf16.gmra.mxu0 %v213
    %v291 = vpop.f32.mrf.mxu0
    %v292 = vadd.f32 %v232, %v291
    %v293 = vpop.f32.mrf.mxu0
    %294 = vdwg.mxu0
    %v295 = vxor.u32 %v292, 2147483648
    %v296 = vmul.f32 %v295, 1.442695
    %v297 = vpow.pop %v296
    %v298 = vadd.f32 %v297, 1.0
    %v299 = vrcp.pop %v298
    %v300 = vmul.f32 %v298, %v299
    %v301 = vsub.f32 1.0, %v300
    %v302 = vmul.f32 %v299, %v301
    %v303 = vadd.f32 %v299, %v302
    %vm304 = vweird.f32 %v298
    %vm305 = vweird.f32 %v299
    %vm306 = vmor %vm304, %vm305
    %v307 = vsel %vm306, %v299, %v303
    %v308 = vand.u32 2147483647, %v298
    %vm309 = vcmp.eq.f32.partialorder %v308, 8.507059e+37
    %v310 = vand.u32 %v298, 2147483648
    %v311 = vor.u32 1.1754944e-38, %v310
    %v312 = vsel %vm309, %v311, %v307
    %v313 = vmul.f32 1.0, %v312
    %v314 = vpack.c.bf16 %v313, %v313
    %315 = vst [vmem:[%s7] sm:$0xf] %v314
    // Predicated region
    $region46: #{actor_forward.1} parent=1 // pred_check
      _
    $region47: #{actor_forward.1} parent=1 // pred_check_branch
      %317 = sbr.rel (0) target = $region49
    $region48: #{actor_forward.1} parent=1 // pred_region
      _
    $region49: #{actor_forward.1} parent=1 // pred_fallthru
      _
    // Predicated region
    $region50: #{actor_forward.1} parent=1 // pred_check
      _
    $region51: #{actor_forward.1} parent=1 // pred_check_branch
      %319 = sbr.rel (0) target = $region53
    $region52: #{actor_forward.1} parent=1 // pred_region
      _
    $region53: #{actor_forward.1} parent=1 // pred_fallthru
      _
    %320 = vsyncpa [#allocation3], 1
    %321 = vsyncpa [#allocation5], 1
    %322 = vsyncpa [#allocation8], 1

</llo_original>
